<compile_context>
chip_gen: v7x
topology: tpu7x:2x2x1
jax: 0.10.0
libtpu: 0.0.40
codegen_flags: <defaults>
</compile_context>

<pallas_src>
import jax
import jax.numpy as jnp
from jax.experimental import pallas as pl
from jax.experimental.pallas import tpu as pltpu

FC1_UNITS = 128
FC2_UNITS = 64


def _pick_tile_b(B, tile_b):
    """Batch tile along the lane axis.

    Must be a multiple of 128 (lane width) unless it equals the full batch.
    Cap at ~B/2 so a v7x megacore (2 TCs, batch axis marked "parallel") always
    has >= 2 grid steps; the extra step is negligible on single-TC v5e/v6e.
    """
    if B <= 128:
        return B
    tile_b = max(128, (tile_b // 128) * 128)
    half = (((B + 1) // 2) + 127) // 128 * 128
    return min(tile_b, half)


def critic_forward(state, action, params, *, tile_b=4096):
    """state: [B, S], action: [B, A] -> q: [B, 1] (f32)."""
    B, S = state.shape
    A = action.shape[1]

    # Packed, feature-major input [state | action]^T : (S+A, B), bf16.
    # A bandwidth-optimal caller (replay buffer) would already hold data in
    # this layout; here it is one cheap XLA pass.
    sa_t = jnp.concatenate([state, action], axis=1).T.astype(jnp.bfloat16)

    tb = _pick_tile_b(B, tile_b)
    grid = (pl.cdiv(B, tb),)
    const = lambda i: (0, 0)  # weights/biases: VMEM-resident across grid steps

    def kernel(sa_ref, w1t_ref, b1_ref, w2st_ref, w2at_ref, b2_ref,
               w3_ref, b3_ref, out_ref):
        # layer 1: xs^T = relu(W1 @ s^T + b1)        (128, tb), bf16 MXU, f32 acc
        xs_t = jnp.dot(w1t_ref[...], sa_ref[:S, :],
                       preferred_element_type=jnp.float32) + b1_ref[...]
        xs_t = jnp.maximum(xs_t, 0.0)

        # layer 2, split contraction (no concat scratch, exact K=128 MXU pass):
        #   h^T = relu(W2[:, :128] @ xs^T + W2[:, 128:] @ a^T + b2)
        # xs is deliberately rounded to bf16 for the MXU (covered by tolerance).
        h_t = jnp.dot(w2st_ref[...], xs_t.astype(jnp.bfloat16),
                      preferred_element_type=jnp.float32) + b2_ref[...]
        act_t = sa_ref[S:, :].astype(jnp.float32)           # (A, tb)
        for j in range(A):                                   # A small & static: VPU FMAs
            h_t = h_t + w2at_ref[:, j:j + 1] * act_t[j:j + 1, :]
        h_t = jnp.maximum(h_t, 0.0)

        # layer 3 (N=1): keep off the MXU -> VPU multiply + sublane reduction.
        # Result is naturally lane-major (1, tb): lane-dense, unmasked store.
        q = jnp.sum(h_t * w3_ref[...], axis=0, keepdims=True) + b3_ref[...]
        out_ref[...] = q.astype(out_ref.dtype)

    q_row = pl.pallas_call(
        kernel,
        out_shape=jax.ShapeDtypeStruct((1, B), jnp.float32),
        grid=grid,
        in_specs=[
            pl.BlockSpec((S + A, tb), lambda i: (0, i)),     # streamed [s|a]^T tile
            pl.BlockSpec((FC1_UNITS, S), const),             # W1       (bf16, resident)
            pl.BlockSpec((FC1_UNITS, 1), const),             # b1       (f32)
            pl.BlockSpec((FC2_UNITS, FC1_UNITS), const),     # W2[:, :128] (bf16, MXU)
            pl.BlockSpec((FC2_UNITS, A), const),             # W2[:, 128:] (f32, VPU)
            pl.BlockSpec((FC2_UNITS, 1), const),             # b2       (f32)
            pl.BlockSpec((FC2_UNITS, 1), const),             # w3 col   (f32, VPU)
            pl.BlockSpec((1, 1), const),                     # b3       (f32)
        ],
        out_specs=pl.BlockSpec((1, tb), lambda i: (0, i)),   # lane-dense output row
        compiler_params=pltpu.CompilerParams(
            dimension_semantics=("parallel",)),              # megacore shard (v7x)
    )(sa_t, params["w1t"], params["b1"], params["w2st"], params["w2at"],
      params["b2"], params["w3c"], params["b3"])

    return q_row.reshape(B, 1)


def init_critic_params(state_size, action_size, seed=0):
    """Deterministic init mirroring Critic.reset_parameters.

    Matches the reference quirk: hidden_init uses weight.size()[0]
    (== out_features) as fan_in; biases are filled with 0.1.
    Weights are stored [out, in] exactly like torch Linear.weight; the MXU
    operands are additionally kept as bf16 copies.
    """
    key = jax.random.PRNGKey(seed)
    k1, k2, k3 = jax.random.split(key, 3)

    lim1 = 1.0 / (FC1_UNITS ** 0.5)
    lim2 = 1.0 / (FC2_UNITS ** 0.5)

    w1 = jax.random.uniform(k1, (FC1_UNITS, state_size),
                            minval=-lim1, maxval=lim1, dtype=jnp.float32)
    w2 = jax.random.uniform(k2, (FC2_UNITS, FC1_UNITS + action_size),
                            minval=-lim2, maxval=lim2, dtype=jnp.float32)
    w3 = jax.random.uniform(k3, (1, FC2_UNITS),
                            minval=-0.003, maxval=0.003, dtype=jnp.float32)

    return {
        # MXU operands (bf16)
        "w1t": w1.astype(jnp.bfloat16),                  # (128, S)
        "w2st": w2[:, :FC1_UNITS].astype(jnp.bfloat16),  # (64, 128)
        # small VPU-side tensors stay f32
        "w2at": w2[:, FC1_UNITS:],                       # (64, A)
        "b1": jnp.full((FC1_UNITS, 1), 0.1, jnp.float32),
        "b2": jnp.full((FC2_UNITS, 1), 0.1, jnp.float32),
        "w3c": w3.T,                                     # (64, 1)
        "b3": jnp.full((1, 1), 0.1, jnp.float32),
        # f32 masters, used only by the pure-JAX reference
        "w1_f32": w1,
        "w2_f32": w2,
    }


def critic_ref(state, action, params):
    """Pure-JAX f32 reference of the PyTorch Critic.forward (f32 master weights)."""
    s = state.astype(jnp.float32)
    a = action.astype(jnp.float32)
    xs = jnp.maximum(s @ params["w1_f32"].T + params["b1"].T, 0.0)
    x = jnp.concatenate([xs, a], axis=1)
    x = jnp.maximum(x @ params["w2_f32"].T + params["b2"].T, 0.0)
    return x @ params["w3c"] + params["b3"]


if __name__ == "__main__":
    batch = 2
    state_size = 33   # Reacher environment state dim
    action_size = 4   # Reacher environment action dim

    params = init_critic_params(state_size, action_size, seed=0)

    key = jax.random.PRNGKey(0)
    ks, ka = jax.random.split(key)
    state = jax.random.normal(ks, (batch, state_size), dtype=jnp.float32)
    action = jax.random.uniform(ka, (batch, action_size),
                                minval=-1.0, maxval=1.0, dtype=jnp.float32)

    q = jax.jit(critic_forward)(state, action, params)
    jax.block_until_ready(q)

    q_ref = critic_ref(state, action, params)
    assert q.shape == (batch, 1)
    # bf16 streamed activations/weights + f32 accumulation vs f32 reference:
    # covers the quantization error explicitly.
    assert jnp.allclose(q, q_ref, atol=1e-2, rtol=1e-2), (q, q_ref)

    print("KERNEL_OK")
</pallas_src>

<mosaic_0001>
module attributes {stable_mosaic.version = 11 : i64} {
  func.func @kernel(%arg0: i32, %arg1: memref<37x2xbf16, #tpu.memory_space<vmem>>, %arg2: memref<128x33xbf16, #tpu.memory_space<vmem>>, %arg3: memref<128x1xf32, #tpu.memory_space<vmem>>, %arg4: memref<64x128xbf16, #tpu.memory_space<vmem>>, %arg5: memref<64x4xf32, #tpu.memory_space<vmem>>, %arg6: memref<64x1xf32, #tpu.memory_space<vmem>>, %arg7: memref<64x1xf32, #tpu.memory_space<vmem>>, %arg8: memref<1x1xf32, #tpu.memory_space<vmem>>, %arg9: memref<1x2xf32, #tpu.memory_space<vmem>>) attributes {dimension_semantics = [#tpu.dimension_semantics<parallel>], iteration_bounds = array<i64: 1>, scalar_prefetch = 0 : i64, scratch_operands = 0 : i64, tpu.core_type = #tpu.core_type<tc>, window_params = [{transform_indices = @transform_0, window_bounds = array<i64: 37, 2>}, {pipeline_mode = #tpu.pipeline_mode<synchronous>, transform_indices = @transform_1, window_bounds = array<i64: 128, 33>}, {pipeline_mode = #tpu.pipeline_mode<synchronous>, transform_indices = @transform_2, window_bounds = array<i64: 128, 1>}, {pipeline_mode = #tpu.pipeline_mode<synchronous>, transform_indices = @transform_3, window_bounds = array<i64: 64, 128>}, {pipeline_mode = #tpu.pipeline_mode<synchronous>, transform_indices = @transform_4, window_bounds = array<i64: 64, 4>}, {pipeline_mode = #tpu.pipeline_mode<synchronous>, transform_indices = @transform_5, window_bounds = array<i64: 64, 1>}, {pipeline_mode = #tpu.pipeline_mode<synchronous>, transform_indices = @transform_6, window_bounds = array<i64: 64, 1>}, {pipeline_mode = #tpu.pipeline_mode<synchronous>, transform_indices = @transform_7, window_bounds = array<i64: 1, 1>}, {transform_indices = @transform_8, window_bounds = array<i64: 1, 2>}]} {
    %c0 = arith.constant 0 : index
    %c0_0 = arith.constant 0 : index
    %0 = vector.load %arg2[%c0, %c0_0] : memref<128x33xbf16, #tpu.memory_space<vmem>>, vector<128x33xbf16>
    %c0_1 = arith.constant 0 : index
    %c0_2 = arith.constant 0 : index
    %1 = vector.load %arg1[%c0_1, %c0_2] : memref<37x2xbf16, #tpu.memory_space<vmem>>, vector<33x2xbf16>
    %cst = arith.constant dense<0.000000e+00> : vector<128x2xf32>
    %2 = tpu.matmul %0, %1, %cst {dimension_numbers = #tpu.dot_dimension_numbers<[1], [0], [0], [1], [0, 0, 1, 1], [], []>} : vector<128x33xbf16>, vector<33x2xbf16>, vector<128x2xf32> -> vector<128x2xf32>
    %c0_3 = arith.constant 0 : index
    %c0_4 = arith.constant 0 : index
    %3 = vector.load %arg3[%c0_3, %c0_4] : memref<128x1xf32, #tpu.memory_space<vmem>>, vector<128x1xf32>
    %4 = vector.broadcast %3 : vector<128x1xf32> to vector<128x2xf32>
    %5 = arith.addf %2, %4 : vector<128x2xf32>
    %cst_5 = arith.constant 0.000000e+00 : f32
    %6 = vector.broadcast %cst_5 : f32 to vector<128x2xf32>
    %7 = arith.maximumf %5, %6 : vector<128x2xf32>
    %c0_6 = arith.constant 0 : index
    %c0_7 = arith.constant 0 : index
    %8 = vector.load %arg4[%c0_6, %c0_7] : memref<64x128xbf16, #tpu.memory_space<vmem>>, vector<64x128xbf16>
    %9 = arith.truncf %7 : vector<128x2xf32> to vector<128x2xbf16>
    %cst_8 = arith.constant dense<0.000000e+00> : vector<64x2xf32>
    %10 = tpu.matmul %8, %9, %cst_8 {dimension_numbers = #tpu.dot_dimension_numbers<[1], [0], [0], [1], [0, 0, 1, 1], [], []>} : vector<64x128xbf16>, vector<128x2xbf16>, vector<64x2xf32> -> vector<64x2xf32>
    %c0_9 = arith.constant 0 : index
    %c0_10 = arith.constant 0 : index
    %11 = vector.load %arg6[%c0_9, %c0_10] : memref<64x1xf32, #tpu.memory_space<vmem>>, vector<64x1xf32>
    %12 = vector.broadcast %11 : vector<64x1xf32> to vector<64x2xf32>
    %13 = arith.addf %10, %12 : vector<64x2xf32>
    %c33 = arith.constant 33 : index
    %c0_11 = arith.constant 0 : index
    %14 = vector.load %arg1[%c33, %c0_11] : memref<37x2xbf16, #tpu.memory_space<vmem>>, vector<4x2xbf16>
    %15 = arith.extf %14 : vector<4x2xbf16> to vector<4x2xf32>
    %c0_12 = arith.constant 0 : index
    %c0_13 = arith.constant 0 : index
    %16 = vector.load %arg5[%c0_12, %c0_13] : memref<64x4xf32, #tpu.memory_space<vmem>>, vector<64x1xf32>
    %17 = vector.extract_strided_slice %15 {offsets = [0, 0], sizes = [1, 2], strides = [1, 1]} : vector<4x2xf32> to vector<1x2xf32>
    %18 = vector.broadcast %16 : vector<64x1xf32> to vector<64x2xf32>
    %19 = vector.broadcast %17 : vector<1x2xf32> to vector<64x2xf32>
    %20 = arith.mulf %18, %19 : vector<64x2xf32>
    %21 = arith.addf %13, %20 : vector<64x2xf32>
    %c0_14 = arith.constant 0 : index
    %c1 = arith.constant 1 : index
    %22 = vector.load %arg5[%c0_14, %c1] : memref<64x4xf32, #tpu.memory_space<vmem>>, vector<64x1xf32>
    %23 = vector.extract_strided_slice %15 {offsets = [1, 0], sizes = [1, 2], strides = [1, 1]} : vector<4x2xf32> to vector<1x2xf32>
    %24 = vector.broadcast %22 : vector<64x1xf32> to vector<64x2xf32>
    %25 = vector.broadcast %23 : vector<1x2xf32> to vector<64x2xf32>
    %26 = arith.mulf %24, %25 : vector<64x2xf32>
    %27 = arith.addf %21, %26 : vector<64x2xf32>
    %c0_15 = arith.constant 0 : index
    %c2 = arith.constant 2 : index
    %28 = vector.load %arg5[%c0_15, %c2] : memref<64x4xf32, #tpu.memory_space<vmem>>, vector<64x1xf32>
    %29 = vector.extract_strided_slice %15 {offsets = [2, 0], sizes = [1, 2], strides = [1, 1]} : vector<4x2xf32> to vector<1x2xf32>
    %30 = vector.broadcast %28 : vector<64x1xf32> to vector<64x2xf32>
    %31 = vector.broadcast %29 : vector<1x2xf32> to vector<64x2xf32>
    %32 = arith.mulf %30, %31 : vector<64x2xf32>
    %33 = arith.addf %27, %32 : vector<64x2xf32>
    %c0_16 = arith.constant 0 : index
    %c3 = arith.constant 3 : index
    %34 = vector.load %arg5[%c0_16, %c3] : memref<64x4xf32, #tpu.memory_space<vmem>>, vector<64x1xf32>
    %35 = vector.extract_strided_slice %15 {offsets = [3, 0], sizes = [1, 2], strides = [1, 1]} : vector<4x2xf32> to vector<1x2xf32>
    %36 = vector.broadcast %34 : vector<64x1xf32> to vector<64x2xf32>
    %37 = vector.broadcast %35 : vector<1x2xf32> to vector<64x2xf32>
    %38 = arith.mulf %36, %37 : vector<64x2xf32>
    %39 = arith.addf %33, %38 : vector<64x2xf32>
    %cst_17 = arith.constant 0.000000e+00 : f32
    %40 = vector.broadcast %cst_17 : f32 to vector<64x2xf32>
    %41 = arith.maximumf %39, %40 : vector<64x2xf32>
    %c0_18 = arith.constant 0 : index
    %c0_19 = arith.constant 0 : index
    %42 = vector.load %arg7[%c0_18, %c0_19] : memref<64x1xf32, #tpu.memory_space<vmem>>, vector<64x1xf32>
    %43 = vector.broadcast %42 : vector<64x1xf32> to vector<64x2xf32>
    %44 = arith.mulf %41, %43 : vector<64x2xf32>
    %cst_20 = arith.constant dense<0.000000e+00> : vector<2xf32>
    %45 = vector.multi_reduction <add>, %44, %cst_20 [0] : vector<64x2xf32> to vector<2xf32>
    %46 = vector.shape_cast %45 : vector<2xf32> to vector<1x2xf32>
    %c0_21 = arith.constant 0 : index
    %c0_22 = arith.constant 0 : index
    %47 = vector.load %arg8[%c0_21, %c0_22] : memref<1x1xf32, #tpu.memory_space<vmem>>, vector<1x1xf32>
    %48 = vector.broadcast %47 : vector<1x1xf32> to vector<1x2xf32>
    %49 = arith.addf %46, %48 : vector<1x2xf32>
    %c0_23 = arith.constant 0 : index
    %c0_24 = arith.constant 0 : index
    %50 = vector.load %arg9[%c0_23, %c0_24] : memref<1x2xf32, #tpu.memory_space<vmem>>, vector<1x2xf32>
    tpu.vector_store %arg9[%c0_23, %c0_24], %49 {strides = array<i32>} : memref<1x2xf32, #tpu.memory_space<vmem>>, vector<1x2xf32>,
    return
  }
  func.func @transform_0(%arg0: i32) -> (i32, i32) {
    %c0_i32 = arith.constant 0 : i32
    %c0_i32_0 = arith.constant 0 : i32
    return %c0_i32, %arg0 : i32, i32
  }
  func.func @transform_1(%arg0: i32) -> (i32, i32) {
    %c0_i32 = arith.constant 0 : i32
    %c0_i32_0 = arith.constant 0 : i32
    %c0_i32_1 = arith.constant 0 : i32
    return %c0_i32, %c0_i32_0 : i32, i32
  }
  func.func @transform_2(%arg0: i32) -> (i32, i32) {
    %c0_i32 = arith.constant 0 : i32
    %c0_i32_0 = arith.constant 0 : i32
    %c0_i32_1 = arith.constant 0 : i32
    return %c0_i32, %c0_i32_0 : i32, i32
  }
  func.func @transform_3(%arg0: i32) -> (i32, i32) {
    %c0_i32 = arith.constant 0 : i32
    %c0_i32_0 = arith.constant 0 : i32
    %c0_i32_1 = arith.constant 0 : i32
    return %c0_i32, %c0_i32_0 : i32, i32
  }
  func.func @transform_4(%arg0: i32) -> (i32, i32) {
    %c0_i32 = arith.constant 0 : i32
    %c0_i32_0 = arith.constant 0 : i32
    %c0_i32_1 = arith.constant 0 : i32
    return %c0_i32, %c0_i32_0 : i32, i32
  }
  func.func @transform_5(%arg0: i32) -> (i32, i32) {
    %c0_i32 = arith.constant 0 : i32
    %c0_i32_0 = arith.constant 0 : i32
    %c0_i32_1 = arith.constant 0 : i32
    return %c0_i32, %c0_i32_0 : i32, i32
  }
  func.func @transform_6(%arg0: i32) -> (i32, i32) {
    %c0_i32 = arith.constant 0 : i32
    %c0_i32_0 = arith.constant 0 : i32
    %c0_i32_1 = arith.constant 0 : i32
    return %c0_i32, %c0_i32_0 : i32, i32
  }
  func.func @transform_7(%arg0: i32) -> (i32, i32) {
    %c0_i32 = arith.constant 0 : i32
    %c0_i32_0 = arith.constant 0 : i32
    %c0_i32_1 = arith.constant 0 : i32
    return %c0_i32, %c0_i32_0 : i32, i32
  }
  func.func @transform_8(%arg0: i32) -> (i32, i32) {
    %c0_i32 = arith.constant 0 : i32
    %c0_i32_0 = arith.constant 0 : i32
    return %c0_i32, %arg0 : i32, i32
  }
}

</mosaic_0001>

<llo_original>
// kernel: critic_forward.1
$region0: #{critic_forward.1}
  #allocation0 [shape = 'u32[]', space=smem, size = 0x4, offset = 0x4, fixed_abs, tag = 'smem constant byte address 0x4 - core index']
  #allocation1 [shape = 'u32[144,128]{1,0:T(1,128)}', space=vmem, size = 0x12000, scoped, tag = 'internal scratch']
  #allocation2 [shape = 'f32[1,1]{1,0:T(1,128)S(1)}', space=vmem, size = 0x200, scoped, tag = 'scoped memory for critic_forward.1']
  %s0 = inlined_call_operand.vmem [shape: bf16[37,2], index: 0, kind: input, shape index: {}]
  %s1 = inlined_call_operand.vmem [shape: bf16[128,33], index: 1, kind: input, shape index: {}]
  %s2 = inlined_call_operand.vmem [shape: f32[128,1], index: 2, kind: input, shape index: {}]
  %s3 = inlined_call_operand.vmem [shape: bf16[64,128], index: 3, kind: input, shape index: {}]
  %s4 = inlined_call_operand.vmem [shape: f32[64,4], index: 4, kind: input, shape index: {}]
  %s5 = inlined_call_operand.vmem [shape: f32[64,1], index: 5, kind: input, shape index: {}]
  %s6 = inlined_call_operand.vmem [shape: f32[64,1], index: 6, kind: input, shape index: {}]
  %s7 = inlined_call_operand.<no memory space> [shape: f32[1,1], index: 7, kind: input, shape index: {}]
  %s8 = inlined_call_operand.hbm [shape: f32[1,2], index: 8, kind: output, shape index: {}]
  %s9 = sld [smem:[#allocation0]]
  $region42: #{critic_forward.1} parent=0
    _
  %s11 = ssub.s32 1, %s9
  %s12 = scalar_select 0, %s11, %s9
  %v13 = vstv %s7
  %14 = vst [vmem:[#allocation2] sm:$0x1] %v13
  $region1: #{critic_forward.1} parent=0
    #allocation3 [shape = 'u8[512]{0}', space=vmem, size = 0x400, scoped, tag = 'output window, operand 0, single buffered']
    #allocation4 [shape = 's32[1]{0}', space=sflag, size = 0x4, scoped, tag = 'scoped memory for critic_forward.1']
    %15 = vsyncpa [#allocation4], 0
    // Predicated region
    $region2: #{critic_forward.1} parent=1 // pred_check
      _
    $region3: #{critic_forward.1} parent=1 // pred_check_branch
      %17 = sbr.rel (0) target = $region5
    $region4: #{critic_forward.1} parent=1 // pred_region
      _
    $region5: #{critic_forward.1} parent=1 // pred_fallthru
      _
    // Predicated region
    $region6: #{critic_forward.1} parent=1 // pred_check
      _
    $region7: #{critic_forward.1} parent=1 // pred_check_branch
      %19 = sbr.rel (0) target = $region9
    $region8: #{critic_forward.1} parent=1 // pred_region
      _
    $region9: #{critic_forward.1} parent=1 // pred_fallthru
      _
    // Predicated region
    $region10: #{critic_forward.1} parent=1 // pred_check
      _
    $region11: #{critic_forward.1} parent=1 // pred_check_branch
      %21 = sbr.rel (0) target = $region13
    $region12: #{critic_forward.1} parent=1 // pred_region
      _
    $region13: #{critic_forward.1} parent=1 // pred_fallthru
      _
    // Predicated region
    $region14: #{critic_forward.1} parent=1 // pred_check
      _
    $region15: #{critic_forward.1} parent=1 // pred_check_branch
      %23 = sbr.rel (0) target = $region17
    $region16: #{critic_forward.1} parent=1 // pred_region
      _
    $region17: #{critic_forward.1} parent=1 // pred_fallthru
      _
    // Predicated region
    $region18: #{critic_forward.1} parent=1 // pred_check
      _
    $region19: #{critic_forward.1} parent=1 // pred_check_branch
      %25 = sbr.rel (0) target = $region21
    $region20: #{critic_forward.1} parent=1 // pred_region
      _
    $region21: #{critic_forward.1} parent=1 // pred_fallthru
      _
    // Predicated region
    $region22: #{critic_forward.1} parent=1 // pred_check
      _
    $region23: #{critic_forward.1} parent=1 // pred_check_branch
      %27 = sbr.rel (0) target = $region25
    $region24: #{critic_forward.1} parent=1 // pred_region
      _
    $region25: #{critic_forward.1} parent=1 // pred_fallthru
      _
    // Predicated region
    $region26: #{critic_forward.1} parent=1 // pred_check
      _
    $region27: #{critic_forward.1} parent=1 // pred_check_branch
      %29 = sbr.rel (0) target = $region29
    $region28: #{critic_forward.1} parent=1 // pred_region
      _
    $region29: #{critic_forward.1} parent=1 // pred_fallthru
      _
    // Predicated region
    $region30: #{critic_forward.1} parent=1 // pred_check
      _
    $region31: #{critic_forward.1} parent=1 // pred_check_branch
      %31 = sbr.rel (0) target = $region33
    $region32: #{critic_forward.1} parent=1 // pred_region
      _
    $region33: #{critic_forward.1} parent=1 // pred_fallthru
      _
    %v33 = vld [vmem:[%s1] sm:$0xf]
    %v34 = vld [vmem:[%s1 + $0x4] sm:$0xf]
    %v35 = vld [vmem:[%s1 + $0x8] sm:$0xf]
    %v36 = vld [vmem:[%s1 + $0xc] sm:$0xf]
    %v37 = vld [vmem:[%s1 + $0x10] sm:$0xf]
    %v38 = vld [vmem:[%s1 + $0x14] sm:$0xf]
    %v39 = vld [vmem:[%s1 + $0x18] sm:$0xf]
    %v40 = vld [vmem:[%s1 + $0x1c] sm:$0xf]
    %v41 = vld [vmem:[%s1 + $0x20] sm:$0xf]
    %v42 = vld [vmem:[%s1 + $0x24] sm:$0xf]
    %v43 = vld [vmem:[%s1 + $0x28] sm:$0xf]
    %v44 = vld [vmem:[%s1 + $0x2c] sm:$0xf]
    %v45 = vld [vmem:[%s1 + $0x30] sm:$0xf]
    %v46 = vld [vmem:[%s1 + $0x34] sm:$0xf]
    %v47 = vld [vmem:[%s1 + $0x38] sm:$0xf]
    %v48 = vld [vmem:[%s1 + $0x3c] sm:$0xf]
    %v49 = vld [vmem:[%s0] sm:$0xf]
    %v50 = vld [vmem:[%s0 + $0x4] sm:$0xf]
    %v51 = vld [vmem:[%s0 + $0x8] sm:$0xf]
    %v52 = vld [vmem:[%s0 + $0xc] sm:$0xf]
    %v53 = vld [vmem:[%s0 + $0x10] sm:$0x1]
    %v54 = vld [vmem:[%s2] sm:$0xff]
    %v55 = vld [vmem:[%s2 + $0x8] sm:$0xff]
    %v56 = vld [vmem:[%s2 + $0x10] sm:$0xff]
    %v57 = vld [vmem:[%s2 + $0x18] sm:$0xff]
    %v58 = vld [vmem:[%s2 + $0x20] sm:$0xff]
    %v59 = vld [vmem:[%s2 + $0x28] sm:$0xff]
    %v60 = vld [vmem:[%s2 + $0x30] sm:$0xff]
    %v61 = vld [vmem:[%s2 + $0x38] sm:$0xff]
    %v62 = vld [vmem:[%s2 + $0x40] sm:$0xff]
    %v63 = vld [vmem:[%s2 + $0x48] sm:$0xff]
    %v64 = vld [vmem:[%s2 + $0x50] sm:$0xff]
    %v65 = vld [vmem:[%s2 + $0x58] sm:$0xff]
    %v66 = vld [vmem:[%s2 + $0x60] sm:$0xff]
    %v67 = vld [vmem:[%s2 + $0x68] sm:$0xff]
    %v68 = vld [vmem:[%s2 + $0x70] sm:$0xff]
    %v69 = vld [vmem:[%s2 + $0x78] sm:$0xff]
    %71 = vset.pattern.permute.xlu0 0
    %72 = vperm.xlu0 %71, %v54
    %v73 = vpop.permute.xlu0 %72
    %76 = vset.pattern.permute.xlu0 0
    %77 = vperm.xlu0 %76, %v55
    %v78 = vpop.permute.xlu0 %77
    %81 = vset.pattern.permute.xlu0 0
    %82 = vperm.xlu0 %81, %v56
    %v83 = vpop.permute.xlu0 %82
    %86 = vset.pattern.permute.xlu0 0
    %87 = vperm.xlu0 %86, %v57
    %v88 = vpop.permute.xlu0 %87
    %91 = vset.pattern.permute.xlu0 0
    %92 = vperm.xlu0 %91, %v58
    %v93 = vpop.permute.xlu0 %92
    %96 = vset.pattern.permute.xlu0 0
    %97 = vperm.xlu0 %96, %v59
    %v98 = vpop.permute.xlu0 %97
    %101 = vset.pattern.permute.xlu0 0
    %102 = vperm.xlu0 %101, %v60
    %v103 = vpop.permute.xlu0 %102
    %106 = vset.pattern.permute.xlu0 0
    %107 = vperm.xlu0 %106, %v61
    %v108 = vpop.permute.xlu0 %107
    %111 = vset.pattern.permute.xlu0 0
    %112 = vperm.xlu0 %111, %v62
    %v113 = vpop.permute.xlu0 %112
    %116 = vset.pattern.permute.xlu0 0
    %117 = vperm.xlu0 %116, %v63
    %v118 = vpop.permute.xlu0 %117
    %121 = vset.pattern.permute.xlu0 0
    %122 = vperm.xlu0 %121, %v64
    %v123 = vpop.permute.xlu0 %122
    %126 = vset.pattern.permute.xlu0 0
    %127 = vperm.xlu0 %126, %v65
    %v128 = vpop.permute.xlu0 %127
    %131 = vset.pattern.permute.xlu0 0
    %132 = vperm.xlu0 %131, %v66
    %v133 = vpop.permute.xlu0 %132
    %136 = vset.pattern.permute.xlu0 0
    %137 = vperm.xlu0 %136, %v67
    %v138 = vpop.permute.xlu0 %137
    %141 = vset.pattern.permute.xlu0 0
    %142 = vperm.xlu0 %141, %v68
    %v143 = vpop.permute.xlu0 %142
    %146 = vset.pattern.permute.xlu0 0
    %147 = vperm.xlu0 %146, %v69
    %v148 = vpop.permute.xlu0 %147
    %v166 = vunpack.c.l.b16 %v33
    %v167 = vunpack.c.l.b16 %v34
    %v168 = vunpack.c.l.b16 %v35
    %v169 = vunpack.c.l.b16 %v36
    %v170 = vunpack.c.l.b16 %v37
    %v171 = vunpack.c.l.b16 %v38
    %v172 = vunpack.c.l.b16 %v39
    %v173 = vunpack.c.l.b16 %v40
    %v174 = vunpack.c.l.b16 %v41
    %v175 = vunpack.c.l.b16 %v42
    %v176 = vunpack.c.l.b16 %v43
    %v177 = vunpack.c.l.b16 %v44
    %v178 = vunpack.c.l.b16 %v45
    %v179 = vunpack.c.l.b16 %v46
    %v180 = vunpack.c.l.b16 %v47
    %v181 = vunpack.c.l.b16 %v48
    %v182 = vpack.c.b16 %v167, %v166
    %v183 = vpack.c.b16 %v169, %v168
    %v184 = vpack.c.b16 %v171, %v170
    %v185 = vpack.c.b16 %v173, %v172
    %v186 = vpack.c.b16 %v175, %v174
    %v187 = vpack.c.b16 %v177, %v176
    %v188 = vpack.c.b16 %v179, %v178
    %v189 = vpack.c.b16 %v181, %v180
    %v195 = vunpack.c.l.b16 %v49
    %v196 = vunpack.c.l.b16 %v50
    %v197 = vunpack.c.l.b16 %v51
    %v198 = vunpack.c.l.b16 %v52
    %v199 = vunpack.c.l.b16 %v53
    %v200 = vpack.c.b16 %v196, %v195
    %v201 = vpack.c.b16 %v198, %v197
    %v202 = vpack.c.b16 %v199, %v199
    %vm205 = vcmask 269312
    %v207 = vsel %vm205, %v182, 0
    %v210 = vsel %vm205, %v183, 0
    %v213 = vsel %vm205, %v184, 0
    %v216 = vsel %vm205, %v185, 0
    %v219 = vsel %vm205, %v186, 0
    %v222 = vsel %vm205, %v187, 0
    %v225 = vsel %vm205, %v188, 0
    %v228 = vsel %vm205, %v189, 0
    %vm230 = vcmask 1040384
    %v231 = vsel 0, 4294967295, 65535
    %v232 = vsel %vm230, %v231, 0
    %v234 = vand.u32 %v202, %v232
    %236 = vmatprep.subr.bf16.mxu0 0
    %237 = vmatpush1.bf16.msra.mxu0 %v200
    %238 = vmatprep.subr.bf16.mxu0 0
    %239 = vmatpush1.bf16.msra.mxu0 %v201
    %240 = vmatprep.subr.bf16.mxu0 0
    %241 = vmatpush1.bf16.msra.mxu0 %v234
    %242 = vmatprep.subr.bf16.mxu0 0
    %243 = vmatpush1.bf16.msra.mxu0 0
    %244 = vmatprep.subr.bf16.mxu0 0
    %245 = vmatpush1.bf16.msra.mxu0 0
    %246 = vmatprep.subr.bf16.mxu0 0
    %247 = vmatpush1.bf16.msra.mxu0 0
    %248 = vmatprep.subr.bf16.mxu0 0
    %249 = vmatpush1.bf16.msra.mxu0 0
    %250 = vmatprep.subr.bf16.mxu0 0
    %251 = vmatpush1.bf16.msra.mxu0 0
    %252 = vmatprep.subr.bf16.mxu0 0
    %253 = vmatpush1.bf16.msra.mxu0 0
    %254 = vmatprep.subr.bf16.mxu0 0
    %255 = vmatpush1.bf16.msra.mxu0 0
    %256 = vmatprep.subr.bf16.mxu0 0
    %257 = vmatpush1.bf16.msra.mxu0 0
    %258 = vmatprep.subr.bf16.mxu0 0
    %259 = vmatpush1.bf16.msra.mxu0 0
    %260 = vmatprep.subr.bf16.mxu0 0
    %261 = vmatpush1.bf16.msra.mxu0 0
    %262 = vmatprep.subr.bf16.mxu0 0
    %263 = vmatpush1.bf16.msra.mxu0 0
    %264 = vmatprep.subr.bf16.mxu0 0
    %265 = vmatpush1.bf16.msra.mxu0 0
    %266 = vmatprep.subr.bf16.mxu0 0
    %267 = vmatpush1.bf16.msra.mxu0 0
    %268 = vmatprep.mubr.bf16.mxu0 0
    %269 = vmatmul.mubr.bf16.gmra.mrb[0].mxu0 %v207
    %v270 = vpop.f32.mrb[0].mxu0
    %v271 = vadd.f32 %v73, %v270
    %v272 = vpop.f32.mrb[0].mxu0
    %v273 = vpop.f32.mrb[0].mxu0
    %v274 = vadd.f32 %v78, %v273
    %v275 = vpop.f32.mrb[0].mxu0
    %276 = vmatprep.mubr.bf16.mxu0 0
    %277 = vmatmul.mubr.bf16.gmra.mrb[0].mxu0 %v210
    %v278 = vpop.f32.mrb[0].mxu0
    %v279 = vadd.f32 %v83, %v278
    %v280 = vpop.f32.mrb[0].mxu0
    %v281 = vpop.f32.mrb[0].mxu0
    %v282 = vadd.f32 %v88, %v281
    %v283 = vpop.f32.mrb[0].mxu0
    %284 = vmatprep.mubr.bf16.mxu0 0
    %285 = vmatmul.mubr.bf16.gmra.mrb[0].mxu0 %v213
    %v286 = vpop.f32.mrb[0].mxu0
    %v287 = vadd.f32 %v93, %v286
    %v288 = vpop.f32.mrb[0].mxu0
    %v289 = vpop.f32.mrb[0].mxu0
    %v290 = vadd.f32 %v98, %v289
    %v291 = vpop.f32.mrb[0].mxu0
    %292 = vmatprep.mubr.bf16.mxu0 0
    %293 = vmatmul.mubr.bf16.gmra.mrb[0].mxu0 %v216
    %v294 = vpop.f32.mrb[0].mxu0
    %v295 = vadd.f32 %v103, %v294
    %v296 = vpop.f32.mrb[0].mxu0
    %v297 = vpop.f32.mrb[0].mxu0
    %v298 = vadd.f32 %v108, %v297
    %v299 = vpop.f32.mrb[0].mxu0
    %300 = vmatprep.mubr.bf16.mxu0 0
    %301 = vmatmul.mubr.bf16.gmra.mrb[0].mxu0 %v219
    %v302 = vpop.f32.mrb[0].mxu0
    %v303 = vadd.f32 %v113, %v302
    %v304 = vpop.f32.mrb[0].mxu0
    %v305 = vpop.f32.mrb[0].mxu0
    %v306 = vadd.f32 %v118, %v305
    %v307 = vpop.f32.mrb[0].mxu0
    %308 = vmatprep.mubr.bf16.mxu0 0
    %309 = vmatmul.mubr.bf16.gmra.mrb[0].mxu0 %v222
    %v310 = vpop.f32.mrb[0].mxu0
    %v311 = vadd.f32 %v123, %v310
    %v312 = vpop.f32.mrb[0].mxu0
    %v313 = vpop.f32.mrb[0].mxu0
    %v314 = vadd.f32 %v128, %v313
    %v315 = vpop.f32.mrb[0].mxu0
    %316 = vmatprep.mubr.bf16.mxu0 0
    %317 = vmatmul.mubr.bf16.gmra.mrb[0].mxu0 %v225
    %v318 = vpop.f32.mrb[0].mxu0
    %v319 = vadd.f32 %v133, %v318
    %v320 = vpop.f32.mrb[0].mxu0
    %v321 = vpop.f32.mrb[0].mxu0
    %v322 = vadd.f32 %v138, %v321
    %v323 = vpop.f32.mrb[0].mxu0
    %324 = vmatprep.mubr.bf16.mxu0 0
    %325 = vmatmul.mubr.bf16.gmra.mrb[0].mxu0 %v228
    %v326 = vpop.f32.mrb[0].mxu0
    %v327 = vadd.f32 %v143, %v326
    %v328 = vpop.f32.mrb[0].mxu0
    %v329 = vpop.f32.mrb[0].mxu0
    %v330 = vadd.f32 %v148, %v329
    %v331 = vpop.f32.mrb[0].mxu0
    %332 = vdwg.mxu0
    %v333 = vmax.f32 %v271, 0.0
    %v334 = vmax.f32 %v274, 0.0
    %v335 = vmax.f32 %v279, 0.0
    %v336 = vmax.f32 %v282, 0.0
    %v337 = vmax.f32 %v287, 0.0
    %v338 = vmax.f32 %v290, 0.0
    %v339 = vmax.f32 %v295, 0.0
    %v340 = vmax.f32 %v298, 0.0
    %v341 = vmax.f32 %v303, 0.0
    %v342 = vmax.f32 %v306, 0.0
    %v343 = vmax.f32 %v311, 0.0
    %v344 = vmax.f32 %v314, 0.0
    %v345 = vmax.f32 %v319, 0.0
    %v346 = vmax.f32 %v322, 0.0
    %v347 = vmax.f32 %v327, 0.0
    %v348 = vmax.f32 %v330, 0.0
    %v349 = vld [vmem:[%s3] sm:$0xf]
    %v350 = vld [vmem:[%s3 + $0x4] sm:$0xf]
    %v351 = vld [vmem:[%s3 + $0x8] sm:$0xf]
    %v352 = vld [vmem:[%s3 + $0xc] sm:$0xf]
    %v353 = vld [vmem:[%s3 + $0x10] sm:$0xf]
    %v354 = vld [vmem:[%s3 + $0x14] sm:$0xf]
    %v355 = vld [vmem:[%s3 + $0x18] sm:$0xf]
    %v356 = vld [vmem:[%s3 + $0x1c] sm:$0xf]
    %v357 = vpack.c.bf16 %v334, %v333
    %v358 = vpack.c.bf16 %v336, %v335
    %v359 = vpack.c.bf16 %v338, %v337
    %v360 = vpack.c.bf16 %v340, %v339
    %v361 = vpack.c.bf16 %v342, %v341
    %v362 = vpack.c.bf16 %v344, %v343
    %v363 = vpack.c.bf16 %v346, %v345
    %v364 = vpack.c.bf16 %v348, %v347
    %v365 = vld [vmem:[%s5] sm:$0xff]
    %v366 = vld [vmem:[%s5 + $0x8] sm:$0xff]
    %v367 = vld [vmem:[%s5 + $0x10] sm:$0xff]
    %v368 = vld [vmem:[%s5 + $0x18] sm:$0xff]
    %v369 = vld [vmem:[%s5 + $0x20] sm:$0xff]
    %v370 = vld [vmem:[%s5 + $0x28] sm:$0xff]
    %v371 = vld [vmem:[%s5 + $0x30] sm:$0xff]
    %v372 = vld [vmem:[%s5 + $0x38] sm:$0xff]
    %374 = vset.pattern.permute.xlu0 0
    %375 = vperm.xlu0 %374, %v365
    %v376 = vpop.permute.xlu0 %375
    %379 = vset.pattern.permute.xlu0 0
    %380 = vperm.xlu0 %379, %v366
    %v381 = vpop.permute.xlu0 %380
    %384 = vset.pattern.permute.xlu0 0
    %385 = vperm.xlu0 %384, %v367
    %v386 = vpop.permute.xlu0 %385
    %389 = vset.pattern.permute.xlu0 0
    %390 = vperm.xlu0 %389, %v368
    %v391 = vpop.permute.xlu0 %390
    %394 = vset.pattern.permute.xlu0 0
    %395 = vperm.xlu0 %394, %v369
    %v396 = vpop.permute.xlu0 %395
    %399 = vset.pattern.permute.xlu0 0
    %400 = vperm.xlu0 %399, %v370
    %v401 = vpop.permute.xlu0 %400
    %404 = vset.pattern.permute.xlu0 0
    %405 = vperm.xlu0 %404, %v371
    %v406 = vpop.permute.xlu0 %405
    %409 = vset.pattern.permute.xlu0 0
    %410 = vperm.xlu0 %409, %v372
    %v411 = vpop.permute.xlu0 %410
    %v421 = vunpack.c.l.b16 %v349
    %v422 = vunpack.c.l.b16 %v350
    %v423 = vunpack.c.l.b16 %v351
    %v424 = vunpack.c.l.b16 %v352
    %v425 = vunpack.c.l.b16 %v353
    %v426 = vunpack.c.l.b16 %v354
    %v427 = vunpack.c.l.b16 %v355
    %v428 = vunpack.c.l.b16 %v356
    %v429 = vpack.c.b16 %v422, %v421
    %v430 = vpack.c.b16 %v424, %v423
    %v431 = vpack.c.b16 %v426, %v425
    %v432 = vpack.c.b16 %v428, %v427
    %437 = vmatprep.subr.bf16.mxu0 0
    %438 = vmatpush1.bf16.msra.mxu0 %v357
    %439 = vmatprep.subr.bf16.mxu0 0
    %440 = vmatpush1.bf16.msra.mxu0 %v358
    %441 = vmatprep.subr.bf16.mxu0 0
    %442 = vmatpush1.bf16.msra.mxu0 %v359
    %443 = vmatprep.subr.bf16.mxu0 0
    %444 = vmatpush1.bf16.msra.mxu0 %v360
    %445 = vmatprep.subr.bf16.mxu0 0
    %446 = vmatpush1.bf16.msra.mxu0 %v361
    %447 = vmatprep.subr.bf16.mxu0 0
    %448 = vmatpush1.bf16.msra.mxu0 %v362
    %449 = vmatprep.subr.bf16.mxu0 0
    %450 = vmatpush1.bf16.msra.mxu0 %v363
    %451 = vmatprep.subr.bf16.mxu0 0
    %452 = vmatpush1.bf16.msra.mxu0 %v364
    %453 = vmatprep.subr.bf16.mxu0 0
    %454 = vmatpush1.bf16.msra.mxu0 0
    %455 = vmatprep.subr.bf16.mxu0 0
    %456 = vmatpush1.bf16.msra.mxu0 0
    %457 = vmatprep.subr.bf16.mxu0 0
    %458 = vmatpush1.bf16.msra.mxu0 0
    %459 = vmatprep.subr.bf16.mxu0 0
    %460 = vmatpush1.bf16.msra.mxu0 0
    %461 = vmatprep.subr.bf16.mxu0 0
    %462 = vmatpush1.bf16.msra.mxu0 0
    %463 = vmatprep.subr.bf16.mxu0 0
    %464 = vmatpush1.bf16.msra.mxu0 0
    %465 = vmatprep.subr.bf16.mxu0 0
    %466 = vmatpush1.bf16.msra.mxu0 0
    %467 = vmatprep.subr.bf16.mxu0 0
    %468 = vmatpush1.bf16.msra.mxu0 0
    %469 = vmatprep.mubr.bf16.mxu0 0
    %470 = vmatmul.mubr.bf16.gmra.mrb[0].mxu0 %v429
    %v471 = vpop.f32.mrb[0].mxu0
    %v472 = vadd.f32 %v376, %v471
    %v473 = vpop.f32.mrb[0].mxu0
    %v474 = vpop.f32.mrb[0].mxu0
    %v475 = vadd.f32 %v381, %v474
    %v476 = vpop.f32.mrb[0].mxu0
    %477 = vmatprep.mubr.bf16.mxu0 0
    %478 = vmatmul.mubr.bf16.gmra.mrb[0].mxu0 %v430
    %v479 = vpop.f32.mrb[0].mxu0
    %v480 = vadd.f32 %v386, %v479
    %v481 = vpop.f32.mrb[0].mxu0
    %v482 = vpop.f32.mrb[0].mxu0
    %v483 = vadd.f32 %v391, %v482
    %v484 = vpop.f32.mrb[0].mxu0
    %485 = vmatprep.mubr.bf16.mxu0 0
    %486 = vmatmul.mubr.bf16.gmra.mrb[0].mxu0 %v431
    %v487 = vpop.f32.mrb[0].mxu0
    %v488 = vadd.f32 %v396, %v487
    %v489 = vpop.f32.mrb[0].mxu0
    %v490 = vpop.f32.mrb[0].mxu0
    %v491 = vadd.f32 %v401, %v490
    %v492 = vpop.f32.mrb[0].mxu0
    %493 = vmatprep.mubr.bf16.mxu0 0
    %494 = vmatmul.mubr.bf16.gmra.mrb[0].mxu0 %v432
    %v495 = vpop.f32.mrb[0].mxu0
    %v496 = vadd.f32 %v406, %v495
    %v497 = vpop.f32.mrb[0].mxu0
    %v498 = vpop.f32.mrb[0].mxu0
    %v499 = vadd.f32 %v411, %v498
    %v500 = vpop.f32.mrb[0].mxu0
    %501 = vdwg.mxu0
    %v502 = vld [vmem:[%s0 + $0x10] sm:$0x7]
    %v503 = vunpack.c.l.bf16 %v502
    %v504 = vld [vmem:[%s4] sm:$0xff]
    %v505 = vld [vmem:[%s4 + $0x8] sm:$0xff]
    %v506 = vld [vmem:[%s4 + $0x10] sm:$0xff]
    %v507 = vld [vmem:[%s4 + $0x18] sm:$0xff]
    %v508 = vld [vmem:[%s4 + $0x20] sm:$0xff]
    %v509 = vld [vmem:[%s4 + $0x28] sm:$0xff]
    %v510 = vld [vmem:[%s4 + $0x30] sm:$0xff]
    %v511 = vld [vmem:[%s4 + $0x38] sm:$0xff]
    %513 = vset.pattern.permute.xlu0 0
    %514 = vperm.xlu0 %513, %v504
    %v515 = vpop.permute.xlu0 %514
    %518 = vset.pattern.permute.xlu0 0
    %519 = vperm.xlu0 %518, %v505
    %v520 = vpop.permute.xlu0 %519
    %523 = vset.pattern.permute.xlu0 0
    %524 = vperm.xlu0 %523, %v506
    %v525 = vpop.permute.xlu0 %524
    %528 = vset.pattern.permute.xlu0 0
    %529 = vperm.xlu0 %528, %v507
    %v530 = vpop.permute.xlu0 %529
    %533 = vset.pattern.permute.xlu0 0
    %534 = vperm.xlu0 %533, %v508
    %v535 = vpop.permute.xlu0 %534
    %538 = vset.pattern.permute.xlu0 0
    %539 = vperm.xlu0 %538, %v509
    %v540 = vpop.permute.xlu0 %539
    %543 = vset.pattern.permute.xlu0 0
    %544 = vperm.xlu0 %543, %v510
    %v545 = vpop.permute.xlu0 %544
    %548 = vset.pattern.permute.xlu0 0
    %549 = vperm.xlu0 %548, %v511
    %v550 = vpop.permute.xlu0 %549
    %v552 = vlaneseq
    %v553 = vshrl.u32 %v552, 7
    %v554 = vsub.s32 1, %v553
    %v555 = vrot.slane %v503, %v554
    %v556 = vmul.f32 %v515, %v555
    %v557 = vmul.f32 %v520, %v555
    %v558 = vmul.f32 %v525, %v555
    %v559 = vmul.f32 %v530, %v555
    %v560 = vmul.f32 %v535, %v555
    %v561 = vmul.f32 %v540, %v555
    %v562 = vmul.f32 %v545, %v555
    %v563 = vmul.f32 %v550, %v555
    %v564 = vadd.f32 %v472, %v556
    %v565 = vadd.f32 %v475, %v557
    %v566 = vadd.f32 %v480, %v558
    %v567 = vadd.f32 %v483, %v559
    %v568 = vadd.f32 %v488, %v560
    %v569 = vadd.f32 %v491, %v561
    %v570 = vadd.f32 %v496, %v562
    %v571 = vadd.f32 %v499, %v563
    %572 = vset.pattern.permute.xlu0 1
    %573 = vperm.xlu0 %572, %v504
    %v574 = vpop.permute.xlu0 %573
    %576 = vset.pattern.permute.xlu0 1
    %577 = vperm.xlu0 %576, %v505
    %v578 = vpop.permute.xlu0 %577
    %580 = vset.pattern.permute.xlu0 1
    %581 = vperm.xlu0 %580, %v506
    %v582 = vpop.permute.xlu0 %581
    %584 = vset.pattern.permute.xlu0 1
    %585 = vperm.xlu0 %584, %v507
    %v586 = vpop.permute.xlu0 %585
    %588 = vset.pattern.permute.xlu0 1
    %589 = vperm.xlu0 %588, %v508
    %v590 = vpop.permute.xlu0 %589
    %592 = vset.pattern.permute.xlu0 1
    %593 = vperm.xlu0 %592, %v509
    %v594 = vpop.permute.xlu0 %593
    %596 = vset.pattern.permute.xlu0 1
    %597 = vperm.xlu0 %596, %v510
    %v598 = vpop.permute.xlu0 %597
    %600 = vset.pattern.permute.xlu0 1
    %601 = vperm.xlu0 %600, %v511
    %v602 = vpop.permute.xlu0 %601
    %v604 = vlaneseq
    %v605 = vshrl.u32 %v604, 7
    %v606 = vsub.s32 2, %v605
    %v607 = vrot.slane %v503, %v606
    %v608 = vmul.f32 %v574, %v607
    %v609 = vmul.f32 %v578, %v607
    %v610 = vmul.f32 %v582, %v607
    %v611 = vmul.f32 %v586, %v607
    %v612 = vmul.f32 %v590, %v607
    %v613 = vmul.f32 %v594, %v607
    %v614 = vmul.f32 %v598, %v607
    %v615 = vmul.f32 %v602, %v607
    %v616 = vadd.f32 %v564, %v608
    %v617 = vadd.f32 %v565, %v609
    %v618 = vadd.f32 %v566, %v610
    %v619 = vadd.f32 %v567, %v611
    %v620 = vadd.f32 %v568, %v612
    %v621 = vadd.f32 %v569, %v613
    %v622 = vadd.f32 %v570, %v614
    %v623 = vadd.f32 %v571, %v615
    %624 = vset.pattern.permute.xlu0 2
    %625 = vperm.xlu0 %624, %v504
    %v626 = vpop.permute.xlu0 %625
    %628 = vset.pattern.permute.xlu0 2
    %629 = vperm.xlu0 %628, %v505
    %v630 = vpop.permute.xlu0 %629
    %632 = vset.pattern.permute.xlu0 2
    %633 = vperm.xlu0 %632, %v506
    %v634 = vpop.permute.xlu0 %633
    %636 = vset.pattern.permute.xlu0 2
    %637 = vperm.xlu0 %636, %v507
    %v638 = vpop.permute.xlu0 %637
    %640 = vset.pattern.permute.xlu0 2
    %641 = vperm.xlu0 %640, %v508
    %v642 = vpop.permute.xlu0 %641
    %644 = vset.pattern.permute.xlu0 2
    %645 = vperm.xlu0 %644, %v509
    %v646 = vpop.permute.xlu0 %645
    %648 = vset.pattern.permute.xlu0 2
    %649 = vperm.xlu0 %648, %v510
    %v650 = vpop.permute.xlu0 %649
    %652 = vset.pattern.permute.xlu0 2
    %653 = vperm.xlu0 %652, %v511
    %v654 = vpop.permute.xlu0 %653
    %v656 = vlaneseq
    %v657 = vshrl.u32 %v656, 7
    %v658 = vsub.s32 3, %v657
    %v659 = vrot.slane %v503, %v658
    %v660 = vmul.f32 %v626, %v659
    %v661 = vmul.f32 %v630, %v659
    %v662 = vmul.f32 %v634, %v659
    %v663 = vmul.f32 %v638, %v659
    %v664 = vmul.f32 %v642, %v659
    %v665 = vmul.f32 %v646, %v659
    %v666 = vmul.f32 %v650, %v659
    %v667 = vmul.f32 %v654, %v659
    %v668 = vadd.f32 %v616, %v660
    %v669 = vadd.f32 %v617, %v661
    %v670 = vadd.f32 %v618, %v662
    %v671 = vadd.f32 %v619, %v663
    %v672 = vadd.f32 %v620, %v664
    %v673 = vadd.f32 %v621, %v665
    %v674 = vadd.f32 %v622, %v666
    %v675 = vadd.f32 %v623, %v667
    %676 = vset.pattern.permute.xlu0 3
    %677 = vperm.xlu0 %676, %v504
    %v678 = vpop.permute.xlu0 %677
    %680 = vset.pattern.permute.xlu0 3
    %681 = vperm.xlu0 %680, %v505
    %v682 = vpop.permute.xlu0 %681
    %684 = vset.pattern.permute.xlu0 3
    %685 = vperm.xlu0 %684, %v506
    %v686 = vpop.permute.xlu0 %685
    %688 = vset.pattern.permute.xlu0 3
    %689 = vperm.xlu0 %688, %v507
    %v690 = vpop.permute.xlu0 %689
    %692 = vset.pattern.permute.xlu0 3
    %693 = vperm.xlu0 %692, %v508
    %v694 = vpop.permute.xlu0 %693
    %696 = vset.pattern.permute.xlu0 3
    %697 = vperm.xlu0 %696, %v509
    %v698 = vpop.permute.xlu0 %697
    %700 = vset.pattern.permute.xlu0 3
    %701 = vperm.xlu0 %700, %v510
    %v702 = vpop.permute.xlu0 %701
    %704 = vset.pattern.permute.xlu0 3
    %705 = vperm.xlu0 %704, %v511
    %v706 = vpop.permute.xlu0 %705
    %v708 = vlaneseq
    %v709 = vshrl.u32 %v708, 7
    %v710 = vsub.s32 4, %v709
    %v711 = vrot.slane %v503, %v710
    %v712 = vmul.f32 %v678, %v711
    %v713 = vmul.f32 %v682, %v711
    %v714 = vmul.f32 %v686, %v711
    %v715 = vmul.f32 %v690, %v711
    %v716 = vmul.f32 %v694, %v711
    %v717 = vmul.f32 %v698, %v711
    %v718 = vmul.f32 %v702, %v711
    %v719 = vmul.f32 %v706, %v711
    %v720 = vadd.f32 %v668, %v712
    %v721 = vadd.f32 %v669, %v713
    %v722 = vadd.f32 %v670, %v714
    %v723 = vadd.f32 %v671, %v715
    %v724 = vadd.f32 %v672, %v716
    %v725 = vadd.f32 %v673, %v717
    %v726 = vadd.f32 %v674, %v718
    %v727 = vadd.f32 %v675, %v719
    %v728 = vmax.f32 %v720, 0.0
    %v729 = vmax.f32 %v721, 0.0
    %v730 = vmax.f32 %v722, 0.0
    %v731 = vmax.f32 %v723, 0.0
    %v732 = vmax.f32 %v724, 0.0
    %v733 = vmax.f32 %v725, 0.0
    %v734 = vmax.f32 %v726, 0.0
    %v735 = vmax.f32 %v727, 0.0
    %v736 = vld [vmem:[%s6] sm:$0xff]
    %v737 = vld [vmem:[%s6 + $0x8] sm:$0xff]
    %v738 = vld [vmem:[%s6 + $0x10] sm:$0xff]
    %v739 = vld [vmem:[%s6 + $0x18] sm:$0xff]
    %v740 = vld [vmem:[%s6 + $0x20] sm:$0xff]
    %v741 = vld [vmem:[%s6 + $0x28] sm:$0xff]
    %v742 = vld [vmem:[%s6 + $0x30] sm:$0xff]
    %v743 = vld [vmem:[%s6 + $0x38] sm:$0xff]
    %745 = vset.pattern.permute.xlu0 0
    %746 = vperm.xlu0 %745, %v736
    %v747 = vpop.permute.xlu0 %746
    %750 = vset.pattern.permute.xlu0 0
    %751 = vperm.xlu0 %750, %v737
    %v752 = vpop.permute.xlu0 %751
    %755 = vset.pattern.permute.xlu0 0
    %756 = vperm.xlu0 %755, %v738
    %v757 = vpop.permute.xlu0 %756
    %760 = vset.pattern.permute.xlu0 0
    %761 = vperm.xlu0 %760, %v739
    %v762 = vpop.permute.xlu0 %761
    %765 = vset.pattern.permute.xlu0 0
    %766 = vperm.xlu0 %765, %v740
    %v767 = vpop.permute.xlu0 %766
    %770 = vset.pattern.permute.xlu0 0
    %771 = vperm.xlu0 %770, %v741
    %v772 = vpop.permute.xlu0 %771
    %775 = vset.pattern.permute.xlu0 0
    %776 = vperm.xlu0 %775, %v742
    %v777 = vpop.permute.xlu0 %776
    %780 = vset.pattern.permute.xlu0 0
    %781 = vperm.xlu0 %780, %v743
    %v782 = vpop.permute.xlu0 %781
    %v784 = vmul.f32 %v728, %v747
    %v785 = vmul.f32 %v729, %v752
    %v786 = vmul.f32 %v730, %v757
    %v787 = vmul.f32 %v731, %v762
    %v788 = vmul.f32 %v732, %v767
    %v789 = vmul.f32 %v733, %v772
    %v790 = vmul.f32 %v734, %v777
    %v791 = vmul.f32 %v735, %v782
    %vm792 = vcmask 15360
    %v793 = vsel %vm792, %v784, 0.0
    %v794 = vsel %vm792, %v785, 0.0
    %v795 = vadd.f32 %v793, %v794
    %v796 = vsel %vm792, %v786, 0.0
    %v797 = vadd.f32 %v795, %v796
    %v798 = vsel %vm792, %v787, 0.0
    %v799 = vadd.f32 %v797, %v798
    %v800 = vsel %vm792, %v788, 0.0
    %v801 = vadd.f32 %v799, %v800
    %v802 = vsel %vm792, %v789, 0.0
    %v803 = vadd.f32 %v801, %v802
    %v804 = vsel %vm792, %v790, 0.0
    %v805 = vadd.f32 %v803, %v804
    %v806 = vsel %vm792, %v791, 0.0
    %v807 = vadd.f32 %v805, %v806
    %v808 = vrot.slane %v807, 4
    %v809 = vadd.f32 %v807, %v808
    %v810 = vrot.slane %v809, 2
    %v811 = vadd.f32 %v809, %v810
    %v812 = vrot.slane %v811, 1
    %v813 = vadd.f32 %v811, %v812
    %v814 = vld [vmem:[#allocation2] sm:$0x1]
    %816 = vset.pattern.permute.xlu0 0
    %817 = vperm.xlu0 %816, %v814
    %v818 = vpop.permute.xlu0 %817
    %v820 = vlaneseq
    %v821 = vshrl.u32 %v820, 7
    %v822 = vsub.s32 0, %v821
    %v823 = vrot.slane %v818, %v822
    %v824 = vadd.f32 %v813, %v823
    %vm825 = vcmask 8192
    %826 = vst.msk [vmem:[#allocation3] sm:$0x1] %vm825, %v824
    // Predicated region
    $region34: #{critic_forward.1} parent=1 // pred_check
      _
    $region35: #{critic_forward.1} parent=1 // pred_check_branch
      %828 = sbr.rel (0) target = $region37
    $region36: #{critic_forward.1} parent=1 // pred_region
      %s830 = ssub.s32 16, 16
      %831 = vsyncadd [#allocation4], %s830
      %s833 = sshll.u32 [#allocation3], 4
      %s834 = int_to_ptr.vmem [resolvable:$true] %s833
      %836 = dma.vmem_to_hbm [thread:$0]  %s834, 16, %s8, [#allocation4]
    $region37: #{critic_forward.1} parent=1 // pred_fallthru
      _
    // Predicated region
    $region38: #{critic_forward.1} parent=1 // pred_check
      _
    $region39: #{critic_forward.1} parent=1 // pred_check_branch
      %838 = sbr.rel (0) target = $region41
    $region40: #{critic_forward.1} parent=1 // pred_region
      %839 = dma.done [#allocation4], 16
    $region41: #{critic_forward.1} parent=1 // pred_fallthru
      _
    %840 = vsyncpa [#allocation4], 1

</llo_original>
